<compile_context>
chip_gen: v6e
topology: v6e:2x2x1
jax: 0.10.0
libtpu: 0.0.40
codegen_flags: <defaults>
</compile_context>

<pallas_src>
import numpy as np
import jax
import jax.numpy as jnp
from jax import lax
from jax.experimental import pallas as pl
from jax.experimental.pallas import tpu as pltpu

LANE = 128  # poses per grid step (lane width)


# ----------------------------------------------------------------------------
# Pallas kernel: vectorized quaternion normalize + quat->matrix + assemble T
#   q_ref : (4, LANE)  rows = (w, x, y, z), lanes = poses
#   t_ref : (3, LANE)  rows = (tx, ty, tz), lanes = poses
#   o_ref : (16, LANE) row k = flattened-row-major T entry k, lanes = poses
# ----------------------------------------------------------------------------
def hand_eye_kernel(q_ref, t_ref, o_ref):
    q = q_ref[...]          # (4, LANE)
    t = t_ref[...]          # (3, LANE)

    qw = q[0:1, :]
    qx = q[1:2, :]
    qy = q[2:3, :]
    qz = q[3:4, :]

    # q = q / ||q||  (vector rsqrt -> EUP slot, stays in vregs)
    inv_norm = lax.rsqrt(qw * qw + qx * qx + qy * qy + qz * qz)
    w = qw * inv_norm
    x = qx * inv_norm
    y = qy * inv_norm
    z = qz * inv_norm

    two = jnp.float32(2.0)
    ones = jnp.ones_like(w)     # (1, LANE)
    zeros = jnp.zeros_like(w)   # (1, LANE)

    xx = x * x
    yy = y * y
    zz = z * z
    xy = x * y
    xz = x * z
    yz = y * z
    wx = w * x
    wy = w * y
    wz = w * z

    # Same formulas as quaternion_to_matrix in the reference module.
    r00 = ones - two * yy - two * zz
    r01 = two * xy - two * wz
    r02 = two * xz + two * wy
    r10 = two * xy + two * wz
    r11 = ones - two * xx - two * zz
    r12 = two * yz - two * wx
    r20 = two * xz - two * wy
    r21 = two * yz + two * wx
    r22 = ones - two * xx - two * yy

    tx = t[0:1, :]
    ty = t[1:2, :]
    tz = t[2:3, :]

    # Flattened row-major 4x4 transform, poses along the lane axis.
    out = jnp.concatenate(
        [
            r00, r01, r02, tx,
            r10, r11, r12, ty,
            r20, r21, r22, tz,
            zeros, zeros, zeros, ones,
        ],
        axis=0,
    )  # (16, LANE)

    o_ref[...] = out


def _hand_eye_pallas(q_t, t_t):
    """q_t: (4, B_pad), t_t: (3, B_pad), B_pad % LANE == 0 -> (16, B_pad)."""
    B_pad = q_t.shape[1]
    grid = (B_pad // LANE,)
    return pl.pallas_call(
        hand_eye_kernel,
        out_shape=jax.ShapeDtypeStruct((16, B_pad), jnp.float32),
        grid=grid,
        in_specs=[
            pl.BlockSpec((4, LANE), lambda i: (0, i)),
            pl.BlockSpec((3, LANE), lambda i: (0, i)),
        ],
        out_specs=pl.BlockSpec((16, LANE), lambda i: (0, i)),
        compiler_params=pltpu.CompilerParams(
            dimension_semantics=("parallel",)
        ),
    )(q_t, t_t)


# ----------------------------------------------------------------------------
# Wrappers
# ----------------------------------------------------------------------------
def hand_eye_batched(q, t):
    """Batched forward: q (B,4), t (B,3) -> (B,4,4) homogeneous transforms."""
    q = jnp.asarray(q, jnp.float32).reshape(-1, 4)
    t = jnp.asarray(t, jnp.float32).reshape(-1, 3)
    B = q.shape[0]
    B_pad = ((B + LANE - 1) // LANE) * LANE

    # Pad the lane axis; padded poses get the identity quaternion so the
    # vector rsqrt stays finite (padded results are discarded anyway).
    q_pad = jnp.zeros((B_pad, 4), jnp.float32).at[:, 0].set(1.0).at[:B, :].set(q)
    t_pad = jnp.zeros((B_pad, 3), jnp.float32).at[:B, :].set(t)

    out = _hand_eye_pallas(q_pad.T, t_pad.T)        # (16, B_pad), lane-dense
    T = out.T.reshape(B_pad, 4, 4)[:B]
    return T


def hand_eye_forward(q, t):
    """Single-pose forward — exact semantics of HandEyeModel.forward().

    NOTE: a single 4x4 pose is 100% launch-overhead bound; if only one pose is
    ever needed, inline the math as plain jnp ops instead of a kernel. The
    kernel exists for the batched path (many poses amortize the launch cost).
    """
    q = jnp.asarray(q, jnp.float32).reshape(4)
    t = jnp.asarray(t, jnp.float32).reshape(3)
    return hand_eye_batched(q[None, :], t[None, :])[0]


# ----------------------------------------------------------------------------
# Host-side parameter initialization (mirrors HandEyeModel.__init__)
# ----------------------------------------------------------------------------
# TODO(synk): matrix_to_quaternion is branchy scalar init code run once in
# __init__; it is kept as host-side numpy rather than a Pallas kernel.
def matrix_to_quaternion_np(R):
    R = np.asarray(R, dtype=np.float32)
    tr = float(np.trace(R))
    if tr > 0:
        S = np.sqrt(tr + 1.0) * 2
        w = 0.25 * S
        x = (R[2, 1] - R[1, 2]) / S
        y = (R[0, 2] - R[2, 0]) / S
        z = (R[1, 0] - R[0, 1]) / S
    elif R[0, 0] > R[1, 1] and R[0, 0] > R[2, 2]:
        S = np.sqrt(1.0 + R[0, 0] - R[1, 1] - R[2, 2]) * 2
        w = (R[2, 1] - R[1, 2]) / S
        x = 0.25 * S
        y = (R[0, 1] + R[1, 0]) / S
        z = (R[0, 2] + R[2, 0]) / S
    elif R[1, 1] > R[2, 2]:
        S = np.sqrt(1.0 + R[1, 1] - R[0, 0] - R[2, 2]) * 2
        w = (R[0, 2] - R[2, 0]) / S
        x = (R[0, 1] + R[1, 0]) / S
        y = 0.25 * S
        z = (R[1, 2] + R[2, 1]) / S
    else:
        S = np.sqrt(1.0 + R[2, 2] - R[0, 0] - R[1, 1]) * 2
        w = (R[1, 0] - R[0, 1]) / S
        x = (R[0, 2] + R[2, 0]) / S
        y = (R[1, 2] + R[2, 1]) / S
        z = 0.25 * S
    return np.array([w, x, y, z], dtype=np.float32)


def quaternion_to_matrix_np(q):
    q = np.asarray(q, dtype=np.float32)
    q = q / np.linalg.norm(q)
    w, x, y, z = q
    return np.array(
        [
            [1 - 2 * y**2 - 2 * z**2, 2 * x * y - 2 * z * w, 2 * x * z + 2 * y * w],
            [2 * x * y + 2 * z * w, 1 - 2 * x**2 - 2 * z**2, 2 * y * z - 2 * x * w],
            [2 * x * z - 2 * y * w, 2 * y * z + 2 * x * w, 1 - 2 * x**2 - 2 * y**2],
        ],
        dtype=np.float32,
    )


def reference_forward_np(q, t):
    """Pure numpy reference of HandEyeModel.forward for validation."""
    R = quaternion_to_matrix_np(q)
    T = np.eye(4, dtype=np.float32)
    T[:3, :3] = R
    T[:3, 3] = np.asarray(t, dtype=np.float32)
    return T


if __name__ == "__main__":
    # Build a deterministic, valid 4x4 homogeneous transform X (the __init__ arg).
    key = jax.random.PRNGKey(0)
    kq, kt, kbq, kbt = jax.random.split(key, 4)
    q_rand = np.asarray(jax.random.normal(kq, (4,), dtype=jnp.float32))
    q_rand = q_rand / np.linalg.norm(q_rand)
    R_init = quaternion_to_matrix_np(q_rand)
    t_init = np.asarray(jax.random.normal(kt, (3,), dtype=jnp.float32))
    X = np.eye(4, dtype=np.float32)
    X[:3, :3] = R_init
    X[:3, 3] = t_init

    # __init__ semantics: extract R, t from X; q = matrix_to_quaternion(R).
    R_param = X[:3, :3]
    t_param = X[:3, 3]
    q_param = matrix_to_quaternion_np(R_param)

    q_jax = jnp.asarray(q_param, dtype=jnp.float32)
    t_jax = jnp.asarray(t_param, dtype=jnp.float32)

    # --- single-pose forward (exact module semantics) ---
    T_out = hand_eye_forward(q_jax, t_jax)
    T_out = jax.block_until_ready(T_out)
    T_ref = reference_forward_np(q_param, t_param)
    np.testing.assert_allclose(np.asarray(T_out), T_ref, rtol=1e-5, atol=1e-5)

    # --- batched forward (the path the kernel is actually built for) ---
    B = 8
    q_batch = np.asarray(jax.random.normal(kbq, (B, 4), dtype=jnp.float32))
    t_batch = np.asarray(jax.random.normal(kbt, (B, 3), dtype=jnp.float32))
    T_batch = hand_eye_batched(jnp.asarray(q_batch), jnp.asarray(t_batch))
    T_batch = jax.block_until_ready(T_batch)
    T_batch_np = np.asarray(T_batch)
    for b in range(B):
        np.testing.assert_allclose(
            T_batch_np[b], reference_forward_np(q_batch[b], t_batch[b]),
            rtol=1e-5, atol=1e-5,
        )

    print("KERNEL_OK")
</pallas_src>

<mosaic_0001>
module attributes {stable_mosaic.version = 11 : i64} {
  func.func @hand_eye_kernel(%arg0: i32, %arg1: memref<4x128xf32, #tpu.memory_space<vmem>>, %arg2: memref<3x128xf32, #tpu.memory_space<vmem>>, %arg3: memref<16x128xf32, #tpu.memory_space<vmem>>) attributes {dimension_semantics = [#tpu.dimension_semantics<parallel>], iteration_bounds = array<i64: 1>, scalar_prefetch = 0 : i64, scratch_operands = 0 : i64, tpu.core_type = #tpu.core_type<tc>, window_params = [{transform_indices = @transform_0, window_bounds = array<i64: 4, 128>}, {transform_indices = @transform_1, window_bounds = array<i64: 3, 128>}, {transform_indices = @transform_2, window_bounds = array<i64: 16, 128>}]} {
    %c0 = arith.constant 0 : index
    %c0_0 = arith.constant 0 : index
    %0 = vector.load %arg1[%c0, %c0_0] : memref<4x128xf32, #tpu.memory_space<vmem>>, vector<4x128xf32>
    %c0_1 = arith.constant 0 : index
    %c0_2 = arith.constant 0 : index
    %1 = vector.load %arg2[%c0_1, %c0_2] : memref<3x128xf32, #tpu.memory_space<vmem>>, vector<3x128xf32>
    %2 = vector.extract_strided_slice %0 {offsets = [0, 0], sizes = [1, 128], strides = [1, 1]} : vector<4x128xf32> to vector<1x128xf32>
    %3 = vector.extract_strided_slice %0 {offsets = [1, 0], sizes = [1, 128], strides = [1, 1]} : vector<4x128xf32> to vector<1x128xf32>
    %4 = vector.extract_strided_slice %0 {offsets = [2, 0], sizes = [1, 128], strides = [1, 1]} : vector<4x128xf32> to vector<1x128xf32>
    %5 = vector.extract_strided_slice %0 {offsets = [3, 0], sizes = [1, 128], strides = [1, 1]} : vector<4x128xf32> to vector<1x128xf32>
    %6 = arith.mulf %2, %2 : vector<1x128xf32>
    %7 = arith.mulf %3, %3 : vector<1x128xf32>
    %8 = arith.addf %6, %7 : vector<1x128xf32>
    %9 = arith.mulf %4, %4 : vector<1x128xf32>
    %10 = arith.addf %8, %9 : vector<1x128xf32>
    %11 = arith.mulf %5, %5 : vector<1x128xf32>
    %12 = arith.addf %10, %11 : vector<1x128xf32>
    %13 = math.rsqrt %12 : vector<1x128xf32>
    %14 = arith.mulf %2, %13 : vector<1x128xf32>
    %15 = arith.mulf %3, %13 : vector<1x128xf32>
    %16 = arith.mulf %4, %13 : vector<1x128xf32>
    %17 = arith.mulf %5, %13 : vector<1x128xf32>
    %cst = arith.constant 1.000000e+00 : f32
    %18 = vector.broadcast %cst : f32 to vector<1x128xf32>
    %cst_3 = arith.constant 0.000000e+00 : f32
    %19 = vector.broadcast %cst_3 : f32 to vector<1x128xf32>
    %20 = arith.mulf %15, %15 : vector<1x128xf32>
    %21 = arith.mulf %16, %16 : vector<1x128xf32>
    %22 = arith.mulf %17, %17 : vector<1x128xf32>
    %23 = arith.mulf %15, %16 : vector<1x128xf32>
    %24 = arith.mulf %15, %17 : vector<1x128xf32>
    %25 = arith.mulf %16, %17 : vector<1x128xf32>
    %26 = arith.mulf %14, %15 : vector<1x128xf32>
    %27 = arith.mulf %14, %16 : vector<1x128xf32>
    %28 = arith.mulf %14, %17 : vector<1x128xf32>
    %cst_4 = arith.constant 2.000000e+00 : f32
    %29 = vector.broadcast %cst_4 : f32 to vector<1x128xf32>
    %30 = arith.mulf %29, %21 : vector<1x128xf32>
    %31 = arith.subf %18, %30 : vector<1x128xf32>
    %cst_5 = arith.constant 2.000000e+00 : f32
    %32 = vector.broadcast %cst_5 : f32 to vector<1x128xf32>
    %33 = arith.mulf %32, %22 : vector<1x128xf32>
    %34 = arith.subf %31, %33 : vector<1x128xf32>
    %cst_6 = arith.constant 2.000000e+00 : f32
    %35 = vector.broadcast %cst_6 : f32 to vector<1x128xf32>
    %36 = arith.mulf %35, %23 : vector<1x128xf32>
    %cst_7 = arith.constant 2.000000e+00 : f32
    %37 = vector.broadcast %cst_7 : f32 to vector<1x128xf32>
    %38 = arith.mulf %37, %28 : vector<1x128xf32>
    %39 = arith.subf %36, %38 : vector<1x128xf32>
    %cst_8 = arith.constant 2.000000e+00 : f32
    %40 = vector.broadcast %cst_8 : f32 to vector<1x128xf32>
    %41 = arith.mulf %40, %24 : vector<1x128xf32>
    %cst_9 = arith.constant 2.000000e+00 : f32
    %42 = vector.broadcast %cst_9 : f32 to vector<1x128xf32>
    %43 = arith.mulf %42, %27 : vector<1x128xf32>
    %44 = arith.addf %41, %43 : vector<1x128xf32>
    %cst_10 = arith.constant 2.000000e+00 : f32
    %45 = vector.broadcast %cst_10 : f32 to vector<1x128xf32>
    %46 = arith.mulf %45, %23 : vector<1x128xf32>
    %cst_11 = arith.constant 2.000000e+00 : f32
    %47 = vector.broadcast %cst_11 : f32 to vector<1x128xf32>
    %48 = arith.mulf %47, %28 : vector<1x128xf32>
    %49 = arith.addf %46, %48 : vector<1x128xf32>
    %cst_12 = arith.constant 2.000000e+00 : f32
    %50 = vector.broadcast %cst_12 : f32 to vector<1x128xf32>
    %51 = arith.mulf %50, %20 : vector<1x128xf32>
    %52 = arith.subf %18, %51 : vector<1x128xf32>
    %cst_13 = arith.constant 2.000000e+00 : f32
    %53 = vector.broadcast %cst_13 : f32 to vector<1x128xf32>
    %54 = arith.mulf %53, %22 : vector<1x128xf32>
    %55 = arith.subf %52, %54 : vector<1x128xf32>
    %cst_14 = arith.constant 2.000000e+00 : f32
    %56 = vector.broadcast %cst_14 : f32 to vector<1x128xf32>
    %57 = arith.mulf %56, %25 : vector<1x128xf32>
    %cst_15 = arith.constant 2.000000e+00 : f32
    %58 = vector.broadcast %cst_15 : f32 to vector<1x128xf32>
    %59 = arith.mulf %58, %26 : vector<1x128xf32>
    %60 = arith.subf %57, %59 : vector<1x128xf32>
    %cst_16 = arith.constant 2.000000e+00 : f32
    %61 = vector.broadcast %cst_16 : f32 to vector<1x128xf32>
    %62 = arith.mulf %61, %24 : vector<1x128xf32>
    %cst_17 = arith.constant 2.000000e+00 : f32
    %63 = vector.broadcast %cst_17 : f32 to vector<1x128xf32>
    %64 = arith.mulf %63, %27 : vector<1x128xf32>
    %65 = arith.subf %62, %64 : vector<1x128xf32>
    %cst_18 = arith.constant 2.000000e+00 : f32
    %66 = vector.broadcast %cst_18 : f32 to vector<1x128xf32>
    %67 = arith.mulf %66, %25 : vector<1x128xf32>
    %cst_19 = arith.constant 2.000000e+00 : f32
    %68 = vector.broadcast %cst_19 : f32 to vector<1x128xf32>
    %69 = arith.mulf %68, %26 : vector<1x128xf32>
    %70 = arith.addf %67, %69 : vector<1x128xf32>
    %cst_20 = arith.constant 2.000000e+00 : f32
    %71 = vector.broadcast %cst_20 : f32 to vector<1x128xf32>
    %72 = arith.mulf %71, %20 : vector<1x128xf32>
    %73 = arith.subf %18, %72 : vector<1x128xf32>
    %cst_21 = arith.constant 2.000000e+00 : f32
    %74 = vector.broadcast %cst_21 : f32 to vector<1x128xf32>
    %75 = arith.mulf %74, %21 : vector<1x128xf32>
    %76 = arith.subf %73, %75 : vector<1x128xf32>
    %77 = vector.extract_strided_slice %1 {offsets = [0, 0], sizes = [1, 128], strides = [1, 1]} : vector<3x128xf32> to vector<1x128xf32>
    %78 = vector.extract_strided_slice %1 {offsets = [1, 0], sizes = [1, 128], strides = [1, 1]} : vector<3x128xf32> to vector<1x128xf32>
    %79 = vector.extract_strided_slice %1 {offsets = [2, 0], sizes = [1, 128], strides = [1, 1]} : vector<3x128xf32> to vector<1x128xf32>
    %80 = tpu.concatenate %34, %39, %44, %77, %49, %55, %60, %78, %65, %70, %76, %79, %19, %19, %19, %18 in 0 : vector<1x128xf32>, vector<1x128xf32>, vector<1x128xf32>, vector<1x128xf32>, vector<1x128xf32>, vector<1x128xf32>, vector<1x128xf32>, vector<1x128xf32>, vector<1x128xf32>, vector<1x128xf32>, vector<1x128xf32>, vector<1x128xf32>, vector<1x128xf32>, vector<1x128xf32>, vector<1x128xf32>, vector<1x128xf32> -> vector<16x128xf32>
    %c0_22 = arith.constant 0 : index
    %c0_23 = arith.constant 0 : index
    %81 = vector.load %arg3[%c0_22, %c0_23] : memref<16x128xf32, #tpu.memory_space<vmem>>, vector<16x128xf32>
    tpu.vector_store %arg3[%c0_22, %c0_23], %80 {strides = array<i32>} : memref<16x128xf32, #tpu.memory_space<vmem>>, vector<16x128xf32>,
    return
  }
  func.func @transform_0(%arg0: i32) -> (i32, i32) {
    %c0_i32 = arith.constant 0 : i32
    %c0_i32_0 = arith.constant 0 : i32
    return %c0_i32, %arg0 : i32, i32
  }
  func.func @transform_1(%arg0: i32) -> (i32, i32) {
    %c0_i32 = arith.constant 0 : i32
    %c0_i32_0 = arith.constant 0 : i32
    return %c0_i32, %arg0 : i32, i32
  }
  func.func @transform_2(%arg0: i32) -> (i32, i32) {
    %c0_i32 = arith.constant 0 : i32
    %c0_i32_0 = arith.constant 0 : i32
    return %c0_i32, %arg0 : i32, i32
  }
}

</mosaic_0001>

<llo_original>
// kernel: tpu_custom_call.1
$region0: #{tpu_custom_call.1}
  #allocation0 [shape = 'u32[]', space=smem, size = 0x4, offset = 0x4, fixed_abs, tag = 'smem constant byte address 0x4 - core index']
  #allocation1 [shape = 'u32[144,128]{1,0:T(1,128)}', space=vmem, size = 0x12000, scoped, tag = 'internal scratch']
  %s0 = inlined_call_operand.hbm [shape: f32[4,128], index: 0, kind: input, shape index: {}]
  %s1 = inlined_call_operand.hbm [shape: f32[3,128], index: 1, kind: input, shape index: {}]
  %s2 = inlined_call_operand.hbm [shape: f32[16,128], index: 2, kind: output, shape index: {}]
  %s3 = sld [smem:[#allocation0]]
  $region26: #{tpu_custom_call.1} parent=0
    _
  %s5 = ssub.s32 1, %s3
  %s6 = scalar_select 0, %s5, %s3
  $region1: #{tpu_custom_call.1} parent=0
    #allocation2 [shape = 'u8[2048]{0}', space=vmem, size = 0x800, scoped, tag = 'input window, operand 0, single buffered']
    #allocation3 [shape = 's32[1]{0}', space=sflag, size = 0x4, scoped, tag = 'scoped memory for tpu_custom_call.1']
    #allocation4 [shape = 's32[1]{0}', space=sflag, size = 0x4, scoped, tag = 'scoped memory for tpu_custom_call.1']
    #allocation5 [shape = 'u8[2048]{0}', space=vmem, size = 0x800, scoped, tag = 'input window, operand 1, single buffered']
    #allocation6 [shape = 's32[1]{0}', space=sflag, size = 0x4, scoped, tag = 'scoped memory for tpu_custom_call.1']
    #allocation7 [shape = 'u8[8192]{0}', space=vmem, size = 0x2000, scoped, tag = 'output window, operand 0, single buffered']
    %7 = vsyncpa [#allocation3], 0
    %8 = vsyncpa [#allocation6], 0
    %9 = vsyncpa [#allocation4], 0
    // Predicated region
    $region2: #{tpu_custom_call.1} parent=1 // pred_check
      _
    $region3: #{tpu_custom_call.1} parent=1 // pred_check_branch
      %11 = sbr.rel (0) target = $region5
    $region4: #{tpu_custom_call.1} parent=1 // pred_region
      %s13 = ssub.s32 64, 64
      %14 = vsyncadd [#allocation3], %s13
      %s16 = sshll.u32 [#allocation2], 4
      %s17 = int_to_ptr.vmem [resolvable:$true] %s16
      %19 = dma.hbm_to_vmem [thread:$0]  %s0, 64, %s17, [#allocation3]
    $region5: #{tpu_custom_call.1} parent=1 // pred_fallthru
      _
    // Predicated region
    $region6: #{tpu_custom_call.1} parent=1 // pred_check
      _
    $region7: #{tpu_custom_call.1} parent=1 // pred_check_branch
      %21 = sbr.rel (0) target = $region9
    $region8: #{tpu_custom_call.1} parent=1 // pred_region
      %s23 = ssub.s32 64, 64
      %24 = vsyncadd [#allocation6], %s23
      %s26 = sshll.u32 [#allocation5], 4
      %s27 = int_to_ptr.vmem [resolvable:$true] %s26
      %29 = dma.hbm_to_vmem [thread:$0]  %s1, 64, %s27, [#allocation6]
    $region9: #{tpu_custom_call.1} parent=1 // pred_fallthru
      _
    // Predicated region
    $region10: #{tpu_custom_call.1} parent=1 // pred_check
      _
    $region11: #{tpu_custom_call.1} parent=1 // pred_check_branch
      %31 = sbr.rel (0) target = $region13
    $region12: #{tpu_custom_call.1} parent=1 // pred_region
      %32 = dma.done [#allocation3], 64
    $region13: #{tpu_custom_call.1} parent=1 // pred_fallthru
      _
    // Predicated region
    $region14: #{tpu_custom_call.1} parent=1 // pred_check
      _
    $region15: #{tpu_custom_call.1} parent=1 // pred_check_branch
      %34 = sbr.rel (0) target = $region17
    $region16: #{tpu_custom_call.1} parent=1 // pred_region
      %35 = dma.done [#allocation6], 64
    $region17: #{tpu_custom_call.1} parent=1 // pred_fallthru
      _
    %v36 = vld [vmem:[#allocation2] sm:$0xf]
    %v37 = vld [vmem:[#allocation5] sm:$0x7]
    %v38 = vmul.f32 %v36, %v36
    %v40 = vrot.slane %v38, 1
    %v42 = vadd.f32 %v38, %v40
    %v43 = vrot.slane %v38, 2
    %v45 = vadd.f32 %v42, %v43
    %v46 = vrot.slane %v38, 3
    %v48 = vadd.f32 %v45, %v46
    %v49 = vrsqrt.pop %v48
    %v50 = vmul.f32 %v36, %v49
    %v52 = vrot.slane %v49, 7
    %v54 = vmul.f32 %v36, %v52
    %v55 = vrot.slane %v49, 6
    %v57 = vmul.f32 %v36, %v55
    %v58 = vrot.slane %v49, 5
    %v60 = vmul.f32 %v36, %v58
    %v61 = vmul.f32 %v54, %v54
    %v62 = vmul.f32 %v57, %v57
    %v63 = vmul.f32 %v60, %v60
    %v65 = vrot.slane %v57, 1
    %v67 = vmul.f32 %v54, %v65
    %v69 = vrot.slane %v60, 2
    %v71 = vmul.f32 %v54, %v69
    %v72 = vrot.slane %v60, 1
    %v74 = vmul.f32 %v57, %v72
    %v76 = vrot.slane %v54, 1
    %v78 = vmul.f32 %v50, %v76
    %v79 = vrot.slane %v57, 2
    %v81 = vmul.f32 %v50, %v79
    %v82 = vrot.slane %v60, 3
    %v84 = vmul.f32 %v50, %v82
    %v85 = vmul.f32 %v62, 2.0
    %v86 = vsub.f32 1.0, %v85
    %v87 = vmul.f32 %v63, 2.0
    %v89 = vrot.slane %v87, 1
    %v91 = vsub.f32 %v86, %v89
    %v92 = vmul.f32 %v67, 2.0
    %v93 = vmul.f32 %v84, 2.0
    %v95 = vrot.slane %v93, 7
    %v97 = vsub.f32 %v92, %v95
    %v98 = vmul.f32 %v71, 2.0
    %v99 = vmul.f32 %v81, 2.0
    %v101 = vrot.slane %v99, 7
    %v103 = vadd.f32 %v98, %v101
    %v104 = vadd.f32 %v92, %v95
    %v105 = vmul.f32 %v61, 2.0
    %v106 = vsub.f32 1.0, %v105
    %v107 = vrot.slane %v87, 2
    %v109 = vsub.f32 %v106, %v107
    %v110 = vmul.f32 %v74, 2.0
    %v111 = vmul.f32 %v78, 2.0
    %v113 = vrot.slane %v111, 6
    %v115 = vsub.f32 %v110, %v113
    %v116 = vsub.f32 %v98, %v101
    %v117 = vadd.f32 %v110, %v113
    %v119 = vrot.slane %v85, 1
    %v121 = vsub.f32 %v106, %v119
    %v123 = vrot.slane %v91, 2
    %v126 = vrot.slane %v103, 7
    %v129 = vrot.slane %v37, 5
    %v132 = vrot.slane %v104, 5
    %v135 = vrot.slane %v109, 4
    %v138 = vrot.slane %v115, 4
    %v140 = vrot.slane %v37, 2
    %v143 = vrot.slane %v116, 1
    %v146 = vrot.slane %v117, 1
    %v149 = vrot.slane %v121, 7
    %v151 = vrot.slane %v37, 7
    %vm153 = vcmask 1040384
    %v154 = vsel %vm153, %v123, %v97
    %vm155 = vcmask 1041408
    %v156 = vsel %vm155, %v154, %v126
    %vm157 = vcmask 1042432
    %v158 = vsel %vm157, %v156, %v129
    %vm159 = vcmask 1043456
    %v160 = vsel %vm159, %v158, %v132
    %vm161 = vcmask 1044480
    %v162 = vsel %vm161, %v160, %v135
    %vm163 = vcmask 1045504
    %v164 = vsel %vm163, %v162, %v138
    %vm165 = vcmask 1046528
    %v166 = vsel %vm165, %v164, %v140
    %v167 = vsel %vm153, %v143, %v146
    %v168 = vsel %vm155, %v167, %v149
    %v169 = vsel %vm157, %v168, %v151
    %v170 = vsel %vm159, %v169, 0.0
    %v171 = vsel %vm161, %v170, 0.0
    %v172 = vsel %vm163, %v171, 0.0
    %v173 = vsel %vm165, %v172, 1.0
    %174 = vst [vmem:[#allocation7] sm:$0xff] %v166
    %175 = vst [vmem:[#allocation7 + $0x8] sm:$0xff] %v173
    // Predicated region
    $region18: #{tpu_custom_call.1} parent=1 // pred_check
      _
    $region19: #{tpu_custom_call.1} parent=1 // pred_check_branch
      %177 = sbr.rel (0) target = $region21
    $region20: #{tpu_custom_call.1} parent=1 // pred_region
      %s179 = ssub.s32 256, 256
      %180 = vsyncadd [#allocation4], %s179
      %s181 = sshll.u32 [#allocation7], 4
      %s182 = int_to_ptr.vmem [resolvable:$true] %s181
      %187 = dma.vmem_to_hbm [thread:$0]  %s182, 256, %s2, [#allocation4], 128, 128, 8
    $region21: #{tpu_custom_call.1} parent=1 // pred_fallthru
      _
    // Predicated region
    $region22: #{tpu_custom_call.1} parent=1 // pred_check
      _
    $region23: #{tpu_custom_call.1} parent=1 // pred_check_branch
      %189 = sbr.rel (0) target = $region25
    $region24: #{tpu_custom_call.1} parent=1 // pred_region
      %190 = dma.done [#allocation4], 256
    $region25: #{tpu_custom_call.1} parent=1 // pred_fallthru
      _
    %191 = vsyncpa [#allocation3], 1
    %192 = vsyncpa [#allocation6], 1
    %193 = vsyncpa [#allocation4], 1

</llo_original>
